<compile_context>
chip_gen: v7x
topology: tpu7x:2x2x1
jax: 0.10.0
libtpu: 0.0.40
codegen_flags: <defaults>
</compile_context>

<pallas_src>
import jax
import jax.numpy as jnp
from jax.experimental import pallas as pl
from jax.experimental.pallas import tpu as pltpu

# Module hyper-parameters (defaults of NormalizedFocalLossSigmoid.__init__)
_ALPHA = 0.25
_GAMMA = 2.0          # hard-coded as an explicit square below
_EPS = 1e-12
_IGNORE_LABEL = -1.0
_WEIGHT = 1.0          # self._weight (weight=None -> 1.0)
_FROM_LOGITS = False   # from_sigmoid=False -> apply sigmoid to pred
_SIZE_AVERAGE = True

_LANES = 128
# Per-input, per-buffer VMEM block budget (bytes): 2 inputs x 2 pipeline
# buffers x 2 MiB = 8 MiB worst case -> fits the scoped VMEM default on
# v5e (16 MiB) and v6e/v7x (32 MiB) with >= 25% headroom.
_BLOCK_BYTES_CAP = 2 * 1024 * 1024


def _make_kernel(lt_total, tile_lt, num_tiles):
    """Kernel computing per-(batch, spatial-tile) partial sums.

    Views: pred/label (1, C, TILE_LT, 128); each output (1, 1, C, 128).
    """
    ragged = (num_tiles * tile_lt) != lt_total

    def kernel(pred_ref, label_ref, loss_ref, sw_ref, beta_ref):
        pred = pred_ref[...].astype(jnp.float32)
        label = label_ref[...].astype(jnp.float32)

        valid = label != _IGNORE_LABEL
        if ragged:
            # Sublane rows of the ragged last spatial tile hold garbage, so
            # they must contribute exactly 0 to every partial sum.
            t = pl.program_id(1)
            row = jax.lax.broadcasted_iota(jnp.int32, (tile_lt, _LANES), 0)
            valid = valid & ((t * tile_lt + row) < lt_total)
        sw = valid.astype(jnp.float32)

        if not _FROM_LOGITS:
            # sigmoid(x) == 0.5 * tanh(0.5 * x) + 0.5 -> one EUP transcendental
            pred = 0.5 * jnp.tanh(0.5 * pred) + 0.5

        # alpha without the sw factor; sw (0/1) is applied once on the loss.
        alpha = jnp.where(label > 0.5, _ALPHA, 1.0 - _ALPHA)
        # pt = 1 for ignored / out-of-bounds pixels -> beta = 0 there.
        pt = jnp.where(valid, 1.0 - jnp.abs(label - pred), 1.0)
        one_minus_pt = 1.0 - pt
        beta = one_minus_pt * one_minus_pt          # gamma == 2 -> square
        log_term = jnp.log(jnp.minimum(pt + _EPS, 1.0))
        loss_raw = (-alpha) * beta * log_term * sw  # pre-normalization loss

        # Reduce over the sublane (spatial-chunk) axis only; keep lanes dense.
        loss_ref[...] = jnp.sum(loss_raw, axis=2).reshape(loss_ref.shape)
        sw_ref[...] = jnp.sum(sw, axis=2).reshape(sw_ref.shape)
        beta_ref[...] = jnp.sum(beta, axis=2).reshape(beta_ref.shape)

    return kernel


def _choose_tile_lt(lt_total, c):
    """Sublane-tile size: multiple of 32 (native for f32/bf16/int8) or full."""
    bytes_per_row = c * _LANES * 4                  # f32 worst case, per input
    rows_cap = max(1, _BLOCK_BYTES_CAP // bytes_per_row)
    if rows_cap >= lt_total:
        return lt_total                             # one full-extent block
    if rows_cap >= 32:
        return (rows_cap // 32) * 32
    return max(8, (rows_cap // 8) * 8)              # very-large-C fallback


@jax.jit
def normalized_focal_loss(pred, label):
    """pred, label: (N, C, H, W); label values in {ignore_label, 0, 1}.

    Label may be any dtype (int8 recommended); it is cast to f32 in-kernel.
    Returns the per-batch loss of shape (N,).
    """
    N, C, H, W = pred.shape
    assert label.shape == pred.shape
    L = H * W

    predf = pred.reshape(N, C, L)
    labelf = label.reshape(N, C, L)
    if L % _LANES != 0:
        # Minimal pad to a lane multiple; padded pixels carry ignore_label so
        # they contribute exactly 0 to every partial sum.
        pad = _LANES - L % _LANES
        predf = jnp.pad(predf, ((0, 0), (0, 0), (0, pad)))
        labelf = jnp.pad(labelf, ((0, 0), (0, 0), (0, pad)),
                         constant_values=labelf.dtype.type(_IGNORE_LABEL))
    lt_total = predf.shape[-1] // _LANES

    tile_lt = _choose_tile_lt(lt_total, C)
    if tile_lt != lt_total and tile_lt % 32 != 0 and labelf.dtype.itemsize < 4:
        labelf = labelf.astype(jnp.float32)         # keep native tiling safe
    num_tiles = pl.cdiv(lt_total, tile_lt)

    pred4 = predf.reshape(N, C, lt_total, _LANES)
    label4 = labelf.reshape(N, C, lt_total, _LANES)

    elems = N * C * lt_total * _LANES
    out_bytes = 3 * N * num_tiles * C * _LANES * 4
    cost = pl.CostEstimate(
        flops=15 * elems,
        transcendentals=2 * elems,                  # tanh + log per element
        bytes_accessed=elems * (4 + label4.dtype.itemsize) + out_bytes,
    )

    part_shape = jax.ShapeDtypeStruct((N, num_tiles, C, _LANES), jnp.float32)
    in_spec = pl.BlockSpec((1, C, tile_lt, _LANES), lambda b, t: (b, 0, t, 0))
    out_spec = pl.BlockSpec((1, 1, C, _LANES), lambda b, t: (b, t, 0, 0))

    loss_p, sw_p, beta_p = pl.pallas_call(
        _make_kernel(lt_total, tile_lt, num_tiles),
        out_shape=(part_shape, part_shape, part_shape),
        grid=(N, num_tiles),
        in_specs=[in_spec, in_spec],
        out_specs=(out_spec, out_spec, out_spec),
        compiler_params=pltpu.CompilerParams(
            dimension_semantics=("parallel", "parallel")),
        cost_estimate=cost,
    )(pred4, label4)

    # Tiny final combine (N * num_tiles * C * 128 elements): the normalization
    # mult is a per-(N, C) scalar, so it factors out of the spatial sum and is
    # applied only after combining all partials.
    loss_c = jnp.sum(loss_p, axis=(1, 3))           # (N, C)
    sw_c = jnp.sum(sw_p, axis=(1, 3))               # (N, C)
    beta_c = jnp.sum(beta_p, axis=(1, 3))           # (N, C)
    mult = sw_c / (beta_c + _EPS)                   # detach_delimeter: fwd only
    total = jnp.sum(loss_c * mult, axis=1)          # (N,)
    if _SIZE_AVERAGE:
        bsum = jnp.sum(sw_c, axis=1)                # sum over C, H, W
        return _WEIGHT * total / (bsum + _EPS)
    return _WEIGHT * total


def _reference(pred, label):
    """Pure-JAX reference mirroring the PyTorch forward (float label)."""
    pred = pred.astype(jnp.float32)
    label = label.astype(jnp.float32)
    one_hot = label > 0.5
    sw_bool = label != _IGNORE_LABEL
    sw = sw_bool.astype(jnp.float32)
    p = jax.nn.sigmoid(pred)
    alpha = jnp.where(one_hot, _ALPHA * sw, (1.0 - _ALPHA) * sw)
    pt = jnp.where(sw_bool, 1.0 - jnp.abs(label - p), jnp.ones_like(p))
    beta = (1.0 - pt) ** _GAMMA
    sw_sum = jnp.sum(sw, axis=(-2, -1), keepdims=True)
    beta_sum = jnp.sum(beta, axis=(-2, -1), keepdims=True)
    mult = sw_sum / (beta_sum + _EPS)
    loss = -alpha * (beta * mult) * jnp.log(jnp.minimum(pt + _EPS, 1.0))
    loss = _WEIGHT * (loss * sw)
    bsum = jnp.sum(sw, axis=(1, 2, 3))
    return jnp.sum(loss, axis=(1, 2, 3)) / (bsum + _EPS)


if __name__ == "__main__":
    key = jax.random.PRNGKey(0)
    k1, k2, k3 = jax.random.split(key, 3)

    N, C, H, W = 2, 4, 16, 16
    pred = jax.random.normal(k1, (N, C, H, W), dtype=jnp.float32)

    # Ternary label {-1, 0, 1} passed as int8 (narrow HBM dtype).
    lbl01 = (jax.random.uniform(k2, (N, C, H, W)) > 0.5).astype(jnp.int8)
    ignore_mask = jax.random.uniform(k3, (N, C, H, W)) < 0.1
    label = jnp.where(ignore_mask, jnp.int8(-1), lbl01)

    out = normalized_focal_loss(pred, label)
    jax.block_until_ready(out)

    ref = _reference(pred, label.astype(jnp.float32))
    assert out.shape == (N,)
    assert jnp.allclose(out, ref, rtol=5e-5, atol=1e-6), (out, ref)

    print("KERNEL_OK")
</pallas_src>

<mosaic_0001>
module attributes {stable_mosaic.version = 11 : i64} {
  func.func @kernel(%arg0: i32, %arg1: i32, %arg2: memref<1x4x2x128xf32, #tpu.memory_space<vmem>>, %arg3: memref<1x4x2x128xi8, #tpu.memory_space<vmem>>, %arg4: memref<1x1x4x128xf32, #tpu.memory_space<vmem>>, %arg5: memref<1x1x4x128xf32, #tpu.memory_space<vmem>>, %arg6: memref<1x1x4x128xf32, #tpu.memory_space<vmem>>) attributes {dimension_semantics = [#tpu.dimension_semantics<parallel>, #tpu.dimension_semantics<parallel>], iteration_bounds = array<i64: 2, 1>, scalar_prefetch = 0 : i64, scratch_operands = 0 : i64, tpu.core_type = #tpu.core_type<tc>, window_params = [{transform_indices = @transform_0, window_bounds = array<i64: 1, 4, 2, 128>}, {transform_indices = @transform_1, window_bounds = array<i64: 1, 4, 2, 128>}, {transform_indices = @transform_2, window_bounds = array<i64: 1, 1, 4, 128>}, {transform_indices = @transform_3, window_bounds = array<i64: 1, 1, 4, 128>}, {transform_indices = @transform_4, window_bounds = array<i64: 1, 1, 4, 128>}]} {
    %c0 = arith.constant 0 : index
    %c0_0 = arith.constant 0 : index
    %c0_1 = arith.constant 0 : index
    %c0_2 = arith.constant 0 : index
    %0 = vector.load %arg2[%c0, %c0_0, %c0_1, %c0_2] : memref<1x4x2x128xf32, #tpu.memory_space<vmem>>, vector<1x4x2x128xf32>
    %c0_3 = arith.constant 0 : index
    %c0_4 = arith.constant 0 : index
    %c0_5 = arith.constant 0 : index
    %c0_6 = arith.constant 0 : index
    %1 = vector.load %arg3[%c0_3, %c0_4, %c0_5, %c0_6] : memref<1x4x2x128xi8, #tpu.memory_space<vmem>>, vector<1x4x2x128xi8>
    %2 = arith.sitofp %1 : vector<1x4x2x128xi8> to vector<1x4x2x128xf32>
    %cst = arith.constant -1.000000e+00 : f32
    %3 = vector.broadcast %cst : f32 to vector<1x4x2x128xf32>
    %4 = arith.cmpf one, %2, %3 : vector<1x4x2x128xf32>
    %5 = arith.extui %4 : vector<1x4x2x128xi1> to vector<1x4x2x128xi32>
    %6 = arith.sitofp %5 : vector<1x4x2x128xi32> to vector<1x4x2x128xf32>
    %cst_7 = arith.constant 5.000000e-01 : f32
    %7 = vector.broadcast %cst_7 : f32 to vector<1x4x2x128xf32>
    %8 = arith.mulf %7, %0 : vector<1x4x2x128xf32>
    %9 = math.tanh %8 : vector<1x4x2x128xf32>
    %cst_8 = arith.constant 5.000000e-01 : f32
    %10 = vector.broadcast %cst_8 : f32 to vector<1x4x2x128xf32>
    %11 = arith.mulf %10, %9 : vector<1x4x2x128xf32>
    %cst_9 = arith.constant 5.000000e-01 : f32
    %12 = vector.broadcast %cst_9 : f32 to vector<1x4x2x128xf32>
    %13 = arith.addf %11, %12 : vector<1x4x2x128xf32>
    %cst_10 = arith.constant 5.000000e-01 : f32
    %14 = vector.broadcast %cst_10 : f32 to vector<1x4x2x128xf32>
    %15 = arith.cmpf ogt, %2, %14 : vector<1x4x2x128xf32>
    %cst_11 = arith.constant 2.500000e-01 : f32
    %cst_12 = arith.constant 7.500000e-01 : f32
    %16 = vector.broadcast %cst_11 : f32 to vector<1x4x2x128xf32>
    %17 = vector.broadcast %cst_12 : f32 to vector<1x4x2x128xf32>
    %18 = arith.select %15, %16, %17 : vector<1x4x2x128xi1>, vector<1x4x2x128xf32>
    %19 = arith.subf %2, %13 : vector<1x4x2x128xf32>
    %20 = math.absf %19 : vector<1x4x2x128xf32>
    %cst_13 = arith.constant 1.000000e+00 : f32
    %21 = vector.broadcast %cst_13 : f32 to vector<1x4x2x128xf32>
    %22 = arith.subf %21, %20 : vector<1x4x2x128xf32>
    %cst_14 = arith.constant 1.000000e+00 : f32
    %23 = vector.broadcast %cst_14 : f32 to vector<1x4x2x128xf32>
    %24 = arith.select %4, %22, %23 : vector<1x4x2x128xi1>, vector<1x4x2x128xf32>
    %cst_15 = arith.constant 1.000000e+00 : f32
    %25 = vector.broadcast %cst_15 : f32 to vector<1x4x2x128xf32>
    %26 = arith.subf %25, %24 : vector<1x4x2x128xf32>
    %27 = arith.mulf %26, %26 : vector<1x4x2x128xf32>
    %cst_16 = arith.constant 9.99999996E-13 : f32
    %28 = vector.broadcast %cst_16 : f32 to vector<1x4x2x128xf32>
    %29 = arith.addf %24, %28 : vector<1x4x2x128xf32>
    %cst_17 = arith.constant 1.000000e+00 : f32
    %30 = vector.broadcast %cst_17 : f32 to vector<1x4x2x128xf32>
    %31 = arith.minimumf %29, %30 : vector<1x4x2x128xf32>
    %32 = math.log %31 : vector<1x4x2x128xf32>
    %cst_18 = arith.constant 0.000000e+00 : f32
    %33 = vector.broadcast %cst_18 : f32 to vector<1x4x2x128xf32>
    %34 = arith.subf %33, %18 : vector<1x4x2x128xf32>
    %35 = arith.mulf %34, %27 : vector<1x4x2x128xf32>
    %36 = arith.mulf %35, %32 : vector<1x4x2x128xf32>
    %37 = arith.mulf %36, %6 : vector<1x4x2x128xf32>
    %cst_19 = arith.constant dense<0.000000e+00> : vector<1x4x128xf32>
    %38 = vector.multi_reduction <add>, %37, %cst_19 [2] : vector<1x4x2x128xf32> to vector<1x4x128xf32>
    %39 = vector.shape_cast %38 : vector<1x4x128xf32> to vector<1x1x4x128xf32>
    %c0_20 = arith.constant 0 : index
    %c0_21 = arith.constant 0 : index
    %c0_22 = arith.constant 0 : index
    %c0_23 = arith.constant 0 : index
    %40 = vector.load %arg4[%c0_20, %c0_21, %c0_22, %c0_23] : memref<1x1x4x128xf32, #tpu.memory_space<vmem>>, vector<1x1x4x128xf32>
    tpu.vector_store %arg4[%c0_20, %c0_21, %c0_22, %c0_23], %39 {strides = array<i32>} : memref<1x1x4x128xf32, #tpu.memory_space<vmem>>, vector<1x1x4x128xf32>,
    %cst_24 = arith.constant dense<0.000000e+00> : vector<1x4x128xf32>
    %41 = vector.multi_reduction <add>, %6, %cst_24 [2] : vector<1x4x2x128xf32> to vector<1x4x128xf32>
    %42 = vector.shape_cast %41 : vector<1x4x128xf32> to vector<1x1x4x128xf32>
    %c0_25 = arith.constant 0 : index
    %c0_26 = arith.constant 0 : index
    %c0_27 = arith.constant 0 : index
    %c0_28 = arith.constant 0 : index
    %43 = vector.load %arg5[%c0_25, %c0_26, %c0_27, %c0_28] : memref<1x1x4x128xf32, #tpu.memory_space<vmem>>, vector<1x1x4x128xf32>
    tpu.vector_store %arg5[%c0_25, %c0_26, %c0_27, %c0_28], %42 {strides = array<i32>} : memref<1x1x4x128xf32, #tpu.memory_space<vmem>>, vector<1x1x4x128xf32>,
    %cst_29 = arith.constant dense<0.000000e+00> : vector<1x4x128xf32>
    %44 = vector.multi_reduction <add>, %27, %cst_29 [2] : vector<1x4x2x128xf32> to vector<1x4x128xf32>
    %45 = vector.shape_cast %44 : vector<1x4x128xf32> to vector<1x1x4x128xf32>
    %c0_30 = arith.constant 0 : index
    %c0_31 = arith.constant 0 : index
    %c0_32 = arith.constant 0 : index
    %c0_33 = arith.constant 0 : index
    %46 = vector.load %arg6[%c0_30, %c0_31, %c0_32, %c0_33] : memref<1x1x4x128xf32, #tpu.memory_space<vmem>>, vector<1x1x4x128xf32>
    tpu.vector_store %arg6[%c0_30, %c0_31, %c0_32, %c0_33], %45 {strides = array<i32>} : memref<1x1x4x128xf32, #tpu.memory_space<vmem>>, vector<1x1x4x128xf32>,
    return
  }
  func.func @transform_0(%arg0: i32, %arg1: i32) -> (i32, i32, i32, i32) {
    %c0_i32 = arith.constant 0 : i32
    %c0_i32_0 = arith.constant 0 : i32
    %c0_i32_1 = arith.constant 0 : i32
    return %arg0, %c0_i32, %arg1, %c0_i32_0 : i32, i32, i32, i32
  }
  func.func @transform_1(%arg0: i32, %arg1: i32) -> (i32, i32, i32, i32) {
    %c0_i32 = arith.constant 0 : i32
    %c0_i32_0 = arith.constant 0 : i32
    %c0_i32_1 = arith.constant 0 : i32
    return %arg0, %c0_i32, %arg1, %c0_i32_0 : i32, i32, i32, i32
  }
  func.func @transform_2(%arg0: i32, %arg1: i32) -> (i32, i32, i32, i32) {
    %c0_i32 = arith.constant 0 : i32
    %c0_i32_0 = arith.constant 0 : i32
    %c0_i32_1 = arith.constant 0 : i32
    return %arg0, %arg1, %c0_i32, %c0_i32_0 : i32, i32, i32, i32
  }
  func.func @transform_3(%arg0: i32, %arg1: i32) -> (i32, i32, i32, i32) {
    %c0_i32 = arith.constant 0 : i32
    %c0_i32_0 = arith.constant 0 : i32
    %c0_i32_1 = arith.constant 0 : i32
    return %arg0, %arg1, %c0_i32, %c0_i32_0 : i32, i32, i32, i32
  }
  func.func @transform_4(%arg0: i32, %arg1: i32) -> (i32, i32, i32, i32) {
    %c0_i32 = arith.constant 0 : i32
    %c0_i32_0 = arith.constant 0 : i32
    %c0_i32_1 = arith.constant 0 : i32
    return %arg0, %arg1, %c0_i32, %c0_i32_0 : i32, i32, i32, i32
  }
}

</mosaic_0001>

<llo_original>
// kernel: normalized_focal_loss.1
$region0: #{normalized_focal_loss.1}
  #allocation0 [shape = 'u32[]', space=smem, size = 0x4, offset = 0x4, fixed_abs, tag = 'smem constant byte address 0x4 - core index']
  #allocation1 [shape = 'u32[144,128]{1,0:T(1,128)}', space=vmem, size = 0x12000, scoped, tag = 'internal scratch']
  %s0 = inlined_call_operand.vmem [shape: f32[2,4,2,128], index: 0, kind: input, shape index: {}]
  %s1 = inlined_call_operand.vmem [shape: s8[2,4,2,128], index: 1, kind: input, shape index: {}]
  %s2 = inlined_call_operand.vmem [shape: f32[2,1,4,128], index: 2, kind: output, shape index: {0}]
  %s3 = inlined_call_operand.vmem [shape: f32[2,1,4,128], index: 3, kind: output, shape index: {1}]
  %s4 = inlined_call_operand.vmem [shape: f32[2,1,4,128], index: 4, kind: output, shape index: {2}]
  %5 = xla_tuple %s2, %s3, %s4
  %s6 = sld [smem:[#allocation0]]
  $region57: #{normalized_focal_loss.1} parent=0
    _
  %s8 = ssub.s32 1, %s6
  %s9 = scalar_select 0, %s8, %s6
  loop: start=0, step=1, limit=4
  $region2: #{normalized_focal_loss.1} parent=0 // loop_pre_header
    _
  $region3: #{normalized_focal_loss.1} parent=0 // loop_header
    %s11 = sphi 0, %s15
    %p12 = scmp.ge.s32.totalorder %s11, 4
    %s18 = sphi 0, %s30
    %s19 = sphi 0, %s26
    %s20 = sphi 0, %s18
    %s21 = sphi 0, %s19
    %s22 = sphi 0, %s20
    %s23 = sphi 0, %s21
    %s35 = sphi 0, %s37
    %s38 = sphi 0, %s35
    %s39 = sphi 0, %s38
    %s55 = sphi 0, %s39
    %s63 = sphi 0, %s65
    %s66 = sphi 0, %s63
    %s67 = sphi 0, %s66
    %s83 = sphi 0, %s67
    %s91 = sphi 0, %s93
    %s94 = sphi 0, %s91
    %s95 = sphi 0, %s94
    %s111 = sphi 0, %s95
    %s119 = sphi 0, %s121
    %s122 = sphi 0, %s119
    %s123 = sphi 0, %s122
    %s139 = sphi 0, %s123
    %s147 = sphi 0, %s149
    %s150 = sphi 0, %s147
    %s151 = sphi 0, %s150
    %s167 = sphi 0, %s151
  $region4: #{normalized_focal_loss.1} parent=0 // loop_header_branch
    %14 = sbr.rel (%p12) target = $region8
  $region5: #{normalized_focal_loss.1} parent=0 // loop_body
    %s16 = ssub.s32 %s11, 1
    %s17 = ssub.s32 %s11, 2
    %s24 = sadd.s32 1, %s19
    %p25 = scmp.ge.s32.totalorder %s24, 1
    %s26 = scalar_select %p25, 0, %s24
    %s27 = sadd.s32 1, %s18
    %s28 = scalar_select %p25, %s27, %s18
    %p29 = scmp.ge.s32.totalorder %s28, 2
    %s30 = scalar_select %p29, 0, %s28
    %s31 = ssub.s32 %s18, %s30
    %s32 = ssub.s32 %s19, %s26
    %s33 = sor.u32 %s31, %s32
    %p34 = scmp.eq.s32.totalorder %s33, 0
    %s36 = sadd.s32 %s35, 1
    %s37 = scalar_select %p34, %s35, %s36
    %p40 = pneg %p34
    %p41 = scmp.eq.s32.totalorder %s11, 1
    %p42 = por %p40, %p41
    %p43 = scmp.ne.s32.totalorder %s35, %s38
    %p44 = scmp.eq.s32.totalorder %s11, 0
    %p45 = por %p43, %p44
    %p46 = scmp.ne.s32.totalorder %s35, %s38
    %p47 = scmp.eq.s32.totalorder %s16, 1
    %p48 = por %p46, %p47
    %p49 = scmp.ne.s32.totalorder %s38, %s39
    %p50 = scmp.eq.s32.totalorder %s16, 0
    %p51 = por %p49, %p50
    %p52 = scmp.ne.s32.totalorder %s38, %s39
    %p53 = scmp.eq.s32.totalorder %s17, 1
    %p54 = por %p52, %p53
    %p56 = scmp.ne.s32.totalorder %s39, %s55
    %p57 = scmp.eq.s32.totalorder %s17, 0
    %p58 = por %p56, %p57
    %s59 = ssub.s32 %s18, %s30
    %s60 = ssub.s32 %s19, %s26
    %s61 = sor.u32 %s59, %s60
    %p62 = scmp.eq.s32.totalorder %s61, 0
    %s64 = sadd.s32 %s63, 1
    %s65 = scalar_select %p62, %s63, %s64
    %p68 = pneg %p62
    %p69 = scmp.eq.s32.totalorder %s11, 1
    %p70 = por %p68, %p69
    %p71 = scmp.ne.s32.totalorder %s63, %s66
    %p72 = scmp.eq.s32.totalorder %s11, 0
    %p73 = por %p71, %p72
    %p74 = scmp.ne.s32.totalorder %s63, %s66
    %p75 = scmp.eq.s32.totalorder %s16, 1
    %p76 = por %p74, %p75
    %p77 = scmp.ne.s32.totalorder %s66, %s67
    %p78 = scmp.eq.s32.totalorder %s16, 0
    %p79 = por %p77, %p78
    %p80 = scmp.ne.s32.totalorder %s66, %s67
    %p81 = scmp.eq.s32.totalorder %s17, 1
    %p82 = por %p80, %p81
    %p84 = scmp.ne.s32.totalorder %s67, %s83
    %p85 = scmp.eq.s32.totalorder %s17, 0
    %p86 = por %p84, %p85
    %s87 = ssub.s32 %s18, %s30
    %s88 = ssub.s32 %s19, %s26
    %s89 = sor.u32 %s87, %s88
    %p90 = scmp.eq.s32.totalorder %s89, 0
    %s92 = sadd.s32 %s91, 1
    %s93 = scalar_select %p90, %s91, %s92
    %p96 = pneg %p90
    %p97 = scmp.eq.s32.totalorder %s11, 1
    %p98 = por %p96, %p97
    %p99 = scmp.ne.s32.totalorder %s91, %s94
    %p100 = scmp.eq.s32.totalorder %s11, 0
    %p101 = por %p99, %p100
    %p102 = scmp.ne.s32.totalorder %s91, %s94
    %p103 = scmp.eq.s32.totalorder %s16, 1
    %p104 = por %p102, %p103
    %p105 = scmp.ne.s32.totalorder %s94, %s95
    %p106 = scmp.eq.s32.totalorder %s16, 0
    %p107 = por %p105, %p106
    %p108 = scmp.ne.s32.totalorder %s94, %s95
    %p109 = scmp.eq.s32.totalorder %s17, 1
    %p110 = por %p108, %p109
    %p112 = scmp.ne.s32.totalorder %s95, %s111
    %p113 = scmp.eq.s32.totalorder %s17, 0
    %p114 = por %p112, %p113
    %s115 = ssub.s32 %s18, %s30
    %s116 = ssub.s32 %s19, %s26
    %s117 = sor.u32 %s115, %s116
    %p118 = scmp.eq.s32.totalorder %s117, 0
    %s120 = sadd.s32 %s119, 1
    %s121 = scalar_select %p118, %s119, %s120
    %p124 = pneg %p118
    %p125 = scmp.eq.s32.totalorder %s11, 1
    %p126 = por %p124, %p125
    %p127 = scmp.ne.s32.totalorder %s119, %s122
    %p128 = scmp.eq.s32.totalorder %s11, 0
    %p129 = por %p127, %p128
    %p130 = scmp.ne.s32.totalorder %s119, %s122
    %p131 = scmp.eq.s32.totalorder %s16, 1
    %p132 = por %p130, %p131
    %p133 = scmp.ne.s32.totalorder %s122, %s123
    %p134 = scmp.eq.s32.totalorder %s16, 0
    %p135 = por %p133, %p134
    %p136 = scmp.ne.s32.totalorder %s122, %s123
    %p137 = scmp.eq.s32.totalorder %s17, 1
    %p138 = por %p136, %p137
    %p140 = scmp.ne.s32.totalorder %s123, %s139
    %p141 = scmp.eq.s32.totalorder %s17, 0
    %p142 = por %p140, %p141
    %s143 = ssub.s32 %s18, %s30
    %s144 = ssub.s32 %s19, %s26
    %s145 = sor.u32 %s143, %s144
    %p146 = scmp.eq.s32.totalorder %s145, 0
    %s148 = sadd.s32 %s147, 1
    %s149 = scalar_select %p146, %s147, %s148
    %p152 = pneg %p146
    %p153 = scmp.eq.s32.totalorder %s11, 1
    %p154 = por %p152, %p153
    %p155 = scmp.ne.s32.totalorder %s147, %s150
    %p156 = scmp.eq.s32.totalorder %s11, 0
    %p157 = por %p155, %p156
    %p158 = scmp.ne.s32.totalorder %s147, %s150
    %p159 = scmp.eq.s32.totalorder %s16, 1
    %p160 = por %p158, %p159
    %p161 = scmp.ne.s32.totalorder %s150, %s151
    %p162 = scmp.eq.s32.totalorder %s16, 0
    %p163 = por %p161, %p162
    %p164 = scmp.ne.s32.totalorder %s150, %s151
    %p165 = scmp.eq.s32.totalorder %s17, 1
    %p166 = por %p164, %p165
    %p168 = scmp.ne.s32.totalorder %s151, %s167
    %p169 = scmp.eq.s32.totalorder %s17, 0
    %p170 = por %p168, %p169
    %p171 = scmp.le.s32.totalorder 1, %s11
    %p172 = scmp.lt.s32.totalorder %s11, 3
    %p173 = pnand %p171, %p172
    %p174 = pneg %p173
    // Predicated region
    $region9: #{normalized_focal_loss.1} parent=5 // pred_check
      _
    $region10: #{normalized_focal_loss.1} parent=5 // pred_check_branch
      %176 = sbr.rel (%p173) target = $region12
    $region11: #{normalized_focal_loss.1} parent=5 // pred_region
      %s177 = ssub.s32 %s11, 1
    $region12: #{normalized_focal_loss.1} parent=5 // pred_fallthru
      _
    %p178 = scmp.lt.s32.totalorder %s11, 2
    // Predicated region
    $region13: #{normalized_focal_loss.1} parent=5 // pred_check
      %p179 = pneg %p178
    $region14: #{normalized_focal_loss.1} parent=5 // pred_check_branch
      %181 = sbr.rel (%p179) target = $region16
    $region15: #{normalized_focal_loss.1} parent=5 // pred_region
      // Predicated region
      $region17: #{normalized_focal_loss.1} parent=15 // pred_check
        %p182 = pneg %p45
      $region18: #{normalized_focal_loss.1} parent=15 // pred_check_branch
        %184 = sbr.rel (%p182) target = $region20
      $region19: #{normalized_focal_loss.1} parent=15 // pred_region
        %p185 = scmp.lt.s32.totalorder %s18, 1
        %s186 = scalar_select %p185, %s18, 1
        %p187 = scmp.lt.s32.totalorder %s19, 0
        %s188 = scalar_select %p187, %s19, 0
        %s189 = smul.addr %s186, 4
        %s190 = sadd.s32 %s188, %s189
        %s191 = smul.addr %s190, 2
        %s192 = scalar_lea.vmem %s0, %s191
      $region20: #{normalized_focal_loss.1} parent=15 // pred_fallthru
        _
      // Predicated region
      $region21: #{normalized_focal_loss.1} parent=15 // pred_check
        %p193 = pneg %p73
      $region22: #{normalized_focal_loss.1} parent=15 // pred_check_branch
        %195 = sbr.rel (%p193) target = $region24
      $region23: #{normalized_focal_loss.1} parent=15 // pred_region
        %p196 = scmp.lt.s32.totalorder %s18, 1
        %s197 = scalar_select %p196, %s18, 1
        %p198 = scmp.lt.s32.totalorder %s19, 0
        %s199 = scalar_select %p198, %s19, 0
        %s200 = smul.addr %s197, 4
        %s201 = sadd.s32 %s199, %s200
        %s202 = scalar_lea.vmem %s1, %s201
      $region24: #{normalized_focal_loss.1} parent=15 // pred_fallthru
        _
    $region16: #{normalized_focal_loss.1} parent=5 // pred_fallthru
      _
    %p203 = scmp.le.s32.totalorder 1, %s11
    %p204 = scmp.lt.s32.totalorder %s11, 3
    %p205 = pnand %p203, %p204
    %p206 = pneg %p205
    // Predicated region
    $region25: #{normalized_focal_loss.1} parent=5 // pred_check
      _
    $region26: #{normalized_focal_loss.1} parent=5 // pred_check_branch
      %208 = sbr.rel (%p205) target = $region28
    $region27: #{normalized_focal_loss.1} parent=5 // pred_region
      %s209 = ssub.s32 %s11, 1
      %p210 = scmp.lt.s32.totalorder %s20, 1
      %s211 = scalar_select %p210, %s20, 1
      %p212 = scmp.lt.s32.totalorder %s21, 0
      %s213 = scalar_select %p212, %s21, 0
      %s214 = smul.addr %s211, 4
      %s215 = sadd.s32 %s213, %s214
      %s216 = smul.addr %s215, 2
      %s217 = scalar_lea.vmem %s0, %s216
      %p218 = pneg %p51
      %p219 = pneg %p48
      %p220 = scmp.lt.s32.totalorder %s20, 1
      %s221 = scalar_select %p220, %s20, 1
      %p222 = scmp.lt.s32.totalorder %s21, 0
      %s223 = scalar_select %p222, %s21, 0
      %s224 = smul.addr %s221, 4
      %s225 = sadd.s32 %s223, %s224
      %s226 = scalar_lea.vmem %s1, %s225
      %p227 = pneg %p79
      %p228 = pneg %p76
      %p229 = pneg %p107
      %p230 = pneg %p104
      %p231 = scmp.lt.s32.totalorder %s20, 1
      %s232 = scalar_select %p231, %s20, 1
      %p233 = scmp.lt.s32.totalorder %s21, 0
      %s234 = scalar_select %p233, %s21, 0
      %s235 = sadd.s32 %s234, %s232
      %s236 = smul.addr %s235, 4
      %s237 = scalar_lea.vmem %s2, %s236
      %p238 = pneg %p135
      %p239 = pneg %p132
      %p240 = scmp.lt.s32.totalorder %s20, 1
      %s241 = scalar_select %p240, %s20, 1
      %p242 = scmp.lt.s32.totalorder %s21, 0
      %s243 = scalar_select %p242, %s21, 0
      %s244 = sadd.s32 %s243, %s241
      %s245 = smul.addr %s244, 4
      %s246 = scalar_lea.vmem %s3, %s245
      %p247 = pneg %p163
      %p248 = pneg %p160
      %p249 = scmp.lt.s32.totalorder %s20, 1
      %s250 = scalar_select %p249, %s20, 1
      %p251 = scmp.lt.s32.totalorder %s21, 0
      %s252 = scalar_select %p251, %s21, 0
      %s253 = sadd.s32 %s252, %s250
      %s254 = smul.addr %s253, 4
      %s255 = scalar_lea.vmem %s4, %s254
      %p256 = scmp.lt.s32.totalorder %s20, 1
      %s257 = scalar_select %p256, %s20, 1
      %p258 = scmp.lt.s32.totalorder %s21, 0
      %s259 = scalar_select %p258, %s21, 0
      %s260 = smul.addr %s257, 4
      %s261 = sadd.s32 %s259, %s260
      %s262 = smul.addr %s261, 2
      %s263 = scalar_lea.vmem %s0, %s262
      %p264 = scmp.lt.s32.totalorder %s20, 1
      %s265 = scalar_select %p264, %s20, 1
      %p266 = scmp.lt.s32.totalorder %s21, 0
      %s267 = scalar_select %p266, %s21, 0
      %s268 = smul.addr %s265, 4
      %s269 = sadd.s32 %s267, %s268
      %s270 = scalar_lea.vmem %s1, %s269
      %p271 = scmp.lt.s32.totalorder %s20, 1
      %s272 = scalar_select %p271, %s20, 1
      %p273 = scmp.lt.s32.totalorder %s21, 0
      %s274 = scalar_select %p273, %s21, 0
      %s275 = sadd.s32 %s274, %s272
      %s276 = smul.addr %s275, 4
      %s277 = scalar_lea.vmem %s2, %s276
      %p278 = scmp.lt.s32.totalorder %s20, 1
      %s279 = scalar_select %p278, %s20, 1
      %p280 = scmp.lt.s32.totalorder %s21, 0
      %s281 = scalar_select %p280, %s21, 0
      %s282 = sadd.s32 %s281, %s279
      %s283 = smul.addr %s282, 4
      %s284 = scalar_lea.vmem %s3, %s283
      %p285 = scmp.lt.s32.totalorder %s20, 1
      %s286 = scalar_select %p285, %s20, 1
      %p287 = scmp.lt.s32.totalorder %s21, 0
      %s288 = scalar_select %p287, %s21, 0
      %s289 = sadd.s32 %s288, %s286
      %s290 = smul.addr %s289, 4
      %s291 = scalar_lea.vmem %s4, %s290
      %v292 = vld [vmem:[%s263] sm:$0x3]
      %v293 = vld [vmem:[%s263 + $0x2] sm:$0x3]
      %v294 = vld [vmem:[%s263 + $0x4] sm:$0x3]
      %v295 = vld [vmem:[%s263 + $0x6] sm:$0x3]
      %v296 = vld [vmem:[%s270] sm:$0x1]
      %v297 = vld [vmem:[%s270 + $0x1] sm:$0x1]
      %v298 = vld [vmem:[%s270 + $0x2] sm:$0x1]
      %v299 = vld [vmem:[%s270 + $0x3] sm:$0x1]
      %v300 = vunpack.c.0.s8 %v296
      %v301 = vunpack.c.0.s8 %v297
      %v302 = vunpack.c.0.s8 %v298
      %v303 = vunpack.c.0.s8 %v299
      %v304 = vcvt.s32.f32 %v300
      %v305 = vcvt.s32.f32 %v301
      %v306 = vcvt.s32.f32 %v302
      %v307 = vcvt.s32.f32 %v303
      %vm308 = vcmp.ne.f32.partialorder %v304, -1.0
      %vm309 = vcmp.ne.f32.partialorder %v305, -1.0
      %vm310 = vcmp.ne.f32.partialorder %v306, -1.0
      %vm311 = vcmp.ne.f32.partialorder %v307, -1.0
      %v312 = vsel %vm308, 1, 0
      %v313 = vsel %vm309, 1, 0
      %v314 = vsel %vm310, 1, 0
      %v315 = vsel %vm311, 1, 0
      %v316 = vcvt.s32.f32 %v312
      %v317 = vcvt.s32.f32 %v313
      %v318 = vcvt.s32.f32 %v314
      %v319 = vcvt.s32.f32 %v315
      %v320 = vmul.f32 %v292, 0.5
      %v321 = vmul.f32 %v293, 0.5
      %v322 = vmul.f32 %v294, 0.5
      %v323 = vmul.f32 %v295, 0.5
      %v324 = vtanh.pop %v320
      %v325 = vtanh.pop %v321
      %v326 = vtanh.pop %v322
      %v327 = vtanh.pop %v323
      %v328 = vmul.f32 %v324, 0.5
      %v329 = vmul.f32 %v325, 0.5
      %v330 = vmul.f32 %v326, 0.5
      %v331 = vmul.f32 %v327, 0.5
      %v332 = vadd.f32 %v328, 0.5
      %v333 = vadd.f32 %v329, 0.5
      %v334 = vadd.f32 %v330, 0.5
      %v335 = vadd.f32 %v331, 0.5
      %vm336 = vcmp.gt.f32.partialorder %v304, 0.5
      %vm337 = vcmp.gt.f32.partialorder %v305, 0.5
      %vm338 = vcmp.gt.f32.partialorder %v306, 0.5
      %vm339 = vcmp.gt.f32.partialorder %v307, 0.5
      %v340 = vsel %vm336, 0.25, 0.75
      %v341 = vsel %vm337, 0.25, 0.75
      %v342 = vsel %vm338, 0.25, 0.75
      %v343 = vsel %vm339, 0.25, 0.75
      %v344 = vsub.f32 %v304, %v332
      %v345 = vsub.f32 %v305, %v333
      %v346 = vsub.f32 %v306, %v334
      %v347 = vsub.f32 %v307, %v335
      %v348 = vand.u32 2147483647, %v344
      %v349 = vand.u32 2147483647, %v345
      %v350 = vand.u32 2147483647, %v346
      %v351 = vand.u32 2147483647, %v347
      %v352 = vsub.f32 1.0, %v348
      %v353 = vsub.f32 1.0, %v349
      %v354 = vsub.f32 1.0, %v350
      %v355 = vsub.f32 1.0, %v351
      %v356 = vsel %vm308, %v352, 1.0
      %v357 = vsel %vm309, %v353, 1.0
      %v358 = vsel %vm310, %v354, 1.0
      %v359 = vsel %vm311, %v355, 1.0
      %v360 = vsub.f32 1.0, %v356
      %v361 = vsub.f32 1.0, %v357
      %v362 = vsub.f32 1.0, %v358
      %v363 = vsub.f32 1.0, %v359
      %v364 = vmul.f32 %v360, %v360
      %v365 = vmul.f32 %v361, %v361
      %v366 = vmul.f32 %v362, %v362
      %v367 = vmul.f32 %v363, %v363
      %v368 = vadd.f32 %v356, 1e-12
      %v369 = vadd.f32 %v357, 1e-12
      %v370 = vadd.f32 %v358, 1e-12
      %v371 = vadd.f32 %v359, 1e-12
      %v372 = vmin.f32 %v368, 1.0
      %v373 = vmin.f32 %v369, 1.0
      %v374 = vmin.f32 %v370, 1.0
      %v375 = vmin.f32 %v371, 1.0
      %v376 = vlog2.pop %v372
      %v377 = vmul.f32 %v376, 0.6931472
      %v378 = vlog2.pop %v373
      %v379 = vmul.f32 %v378, 0.6931472
      %v380 = vlog2.pop %v374
      %v381 = vmul.f32 %v380, 0.6931472
      %v382 = vlog2.pop %v375
      %v383 = vmul.f32 %v382, 0.6931472
      %v384 = vsub.f32 0.0, %v340
      %v385 = vsub.f32 0.0, %v341
      %v386 = vsub.f32 0.0, %v342
      %v387 = vsub.f32 0.0, %v343
      %v388 = vmul.f32 %v384, %v364
      %v389 = vmul.f32 %v385, %v365
      %v390 = vmul.f32 %v386, %v366
      %v391 = vmul.f32 %v387, %v367
      %v392 = vmul.f32 %v388, %v377
      %v393 = vmul.f32 %v389, %v379
      %v394 = vmul.f32 %v390, %v381
      %v395 = vmul.f32 %v391, %v383
      %v396 = vmul.f32 %v392, %v316
      %v397 = vmul.f32 %v393, %v317
      %v398 = vmul.f32 %v394, %v318
      %v399 = vmul.f32 %v395, %v319
      %vm400 = vcmask 1041408
      %v401 = vsel %vm400, %v396, 0.0
      %v402 = vrot.slane %v401, 4
      %v403 = vadd.f32 %v401, %v402
      %v404 = vrot.slane %v403, 2
      %v405 = vadd.f32 %v403, %v404
      %v406 = vrot.slane %v405, 1
      %v407 = vadd.f32 %v405, %v406
      %v408 = vsel %vm400, %v397, 0.0
      %v409 = vrot.slane %v408, 4
      %v410 = vadd.f32 %v408, %v409
      %v411 = vrot.slane %v410, 2
      %v412 = vadd.f32 %v410, %v411
      %v413 = vrot.slane %v412, 1
      %v414 = vadd.f32 %v412, %v413
      %v415 = vsel %vm400, %v398, 0.0
      %v416 = vrot.slane %v415, 4
      %v417 = vadd.f32 %v415, %v416
      %v418 = vrot.slane %v417, 2
      %v419 = vadd.f32 %v417, %v418
      %v420 = vrot.slane %v419, 1
      %v421 = vadd.f32 %v419, %v420
      %v422 = vsel %vm400, %v399, 0.0
      %v423 = vrot.slane %v422, 4
      %v424 = vadd.f32 %v422, %v423
      %v425 = vrot.slane %v424, 2
      %v426 = vadd.f32 %v424, %v425
      %v427 = vrot.slane %v426, 1
      %v428 = vadd.f32 %v426, %v427
      %vm433 = vcmask 1041409
      %v434 = vsel %vm433, %v414, %v407
      %vm435 = vcmask 1042434
      %v436 = vsel %vm435, %v421, %v434
      %vm437 = vcmask 1043459
      %v438 = vsel %vm437, %v428, %v436
      %440 = vst [vmem:[%s277] sm:$0xf] %v438
      %v441 = vsel %vm400, %v316, 0.0
      %v442 = vrot.slane %v441, 4
      %v443 = vadd.f32 %v441, %v442
      %v444 = vrot.slane %v443, 2
      %v445 = vadd.f32 %v443, %v444
      %v446 = vrot.slane %v445, 1
      %v447 = vadd.f32 %v445, %v446
      %v448 = vsel %vm400, %v317, 0.0
      %v449 = vrot.slane %v448, 4
      %v450 = vadd.f32 %v448, %v449
      %v451 = vrot.slane %v450, 2
      %v452 = vadd.f32 %v450, %v451
      %v453 = vrot.slane %v452, 1
      %v454 = vadd.f32 %v452, %v453
      %v455 = vsel %vm400, %v318, 0.0
      %v456 = vrot.slane %v455, 4
      %v457 = vadd.f32 %v455, %v456
      %v458 = vrot.slane %v457, 2
      %v459 = vadd.f32 %v457, %v458
      %v460 = vrot.slane %v459, 1
      %v461 = vadd.f32 %v459, %v460
      %v462 = vsel %vm400, %v319, 0.0
      %v463 = vrot.slane %v462, 4
      %v464 = vadd.f32 %v462, %v463
      %v465 = vrot.slane %v464, 2
      %v466 = vadd.f32 %v464, %v465
      %v467 = vrot.slane %v466, 1
      %v468 = vadd.f32 %v466, %v467
      %v473 = vsel %vm433, %v454, %v447
      %v474 = vsel %vm435, %v461, %v473
      %v475 = vsel %vm437, %v468, %v474
      %477 = vst [vmem:[%s284] sm:$0xf] %v475
      %v478 = vsel %vm400, %v364, 0.0
      %v479 = vrot.slane %v478, 4
      %v480 = vadd.f32 %v478, %v479
      %v481 = vrot.slane %v480, 2
      %v482 = vadd.f32 %v480, %v481
      %v483 = vrot.slane %v482, 1
      %v484 = vadd.f32 %v482, %v483
      %v485 = vsel %vm400, %v365, 0.0
      %v486 = vrot.slane %v485, 4
      %v487 = vadd.f32 %v485, %v486
      %v488 = vrot.slane %v487, 2
      %v489 = vadd.f32 %v487, %v488
      %v490 = vrot.slane %v489, 1
      %v491 = vadd.f32 %v489, %v490
      %v492 = vsel %vm400, %v366, 0.0
      %v493 = vrot.slane %v492, 4
      %v494 = vadd.f32 %v492, %v493
      %v495 = vrot.slane %v494, 2
      %v496 = vadd.f32 %v494, %v495
      %v497 = vrot.slane %v496, 1
      %v498 = vadd.f32 %v496, %v497
      %v499 = vsel %vm400, %v367, 0.0
      %v500 = vrot.slane %v499, 4
      %v501 = vadd.f32 %v499, %v500
      %v502 = vrot.slane %v501, 2
      %v503 = vadd.f32 %v501, %v502
      %v504 = vrot.slane %v503, 1
      %v505 = vadd.f32 %v503, %v504
      %v510 = vsel %vm433, %v491, %v484
      %v511 = vsel %vm435, %v498, %v510
      %v512 = vsel %vm437, %v505, %v511
      %514 = vst [vmem:[%s291] sm:$0xf] %v512
      %p515 = scmp.lt.s32.totalorder %s20, 1
      %s516 = scalar_select %p515, %s20, 1
      %p517 = scmp.lt.s32.totalorder %s21, 0
      %s518 = scalar_select %p517, %s21, 0
      %s519 = sadd.s32 %s518, %s516
      %s520 = smul.addr %s519, 4
      %s521 = scalar_lea.vmem %s2, %s520
      %p522 = scmp.lt.s32.totalorder %s20, 1
      %s523 = scalar_select %p522, %s20, 1
      %p524 = scmp.lt.s32.totalorder %s21, 0
      %s525 = scalar_select %p524, %s21, 0
      %s526 = sadd.s32 %s525, %s523
      %s527 = smul.addr %s526, 4
      %s528 = scalar_lea.vmem %s3, %s527
      %p529 = scmp.lt.s32.totalorder %s20, 1
      %s530 = scalar_select %p529, %s20, 1
      %p531 = scmp.lt.s32.totalorder %s21, 0
      %s532 = scalar_select %p531, %s21, 0
      %s533 = sadd.s32 %s532, %s530
      %s534 = smul.addr %s533, 4
      %s535 = scalar_lea.vmem %s4, %s534
      // Predicated region
      $region29: #{normalized_focal_loss.1} parent=27 // pred_check
        %p536 = pneg %p104
      $region30: #{normalized_focal_loss.1} parent=27 // pred_check_branch
        %538 = sbr.rel (%p536) target = $region32
      $region31: #{normalized_focal_loss.1} parent=27 // pred_region
        _
      $region32: #{normalized_focal_loss.1} parent=27 // pred_fallthru
        _
      // Predicated region
      $region33: #{normalized_focal_loss.1} parent=27 // pred_check
        %p539 = pneg %p132
      $region34: #{normalized_focal_loss.1} parent=27 // pred_check_branch
        %541 = sbr.rel (%p539) target = $region36
      $region35: #{normalized_focal_loss.1} parent=27 // pred_region
        _
      $region36: #{normalized_focal_loss.1} parent=27 // pred_fallthru
        _
      // Predicated region
      $region37: #{normalized_focal_loss.1} parent=27 // pred_check
        %p542 = pneg %p160
      $region38: #{normalized_focal_loss.1} parent=27 // pred_check_branch
        %544 = sbr.rel (%p542) target = $region40
      $region39: #{normalized_focal_loss.1} parent=27 // pred_region
        _
      $region40: #{normalized_focal_loss.1} parent=27 // pred_fallthru
        _
    $region28: #{normalized_focal_loss.1} parent=5 // pred_fallthru
      _
    %p545 = scmp.le.s32.totalorder 2, %s11
    // Predicated region
    $region41: #{normalized_focal_loss.1} parent=5 // pred_check
      %p546 = pneg %p545
    $region42: #{normalized_focal_loss.1} parent=5 // pred_check_branch
      %548 = sbr.rel (%p546) target = $region44
    $region43: #{normalized_focal_loss.1} parent=5 // pred_region
      %s549 = ssub.s32 %s11, 2
      // Predicated region
      $region45: #{normalized_focal_loss.1} parent=43 // pred_check
        %p550 = pneg %p110
      $region46: #{normalized_focal_loss.1} parent=43 // pred_check_branch
        %552 = sbr.rel (%p550) target = $region48
      $region47: #{normalized_focal_loss.1} parent=43 // pred_region
        %p553 = scmp.lt.s32.totalorder %s22, 1
        %s554 = scalar_select %p553, %s22, 1
        %p555 = scmp.lt.s32.totalorder %s23, 0
        %s556 = scalar_select %p555, %s23, 0
        %s557 = sadd.s32 %s556, %s554
        %s558 = smul.addr %s557, 4
        %s559 = scalar_lea.vmem %s2, %s558
      $region48: #{normalized_focal_loss.1} parent=43 // pred_fallthru
        _
      // Predicated region
      $region49: #{normalized_focal_loss.1} parent=43 // pred_check
        %p560 = pneg %p138
      $region50: #{normalized_focal_loss.1} parent=43 // pred_check_branch
        %562 = sbr.rel (%p560) target = $region52
      $region51: #{normalized_focal_loss.1} parent=43 // pred_region
        %p563 = scmp.lt.s32.totalorder %s22, 1
        %s564 = scalar_select %p563, %s22, 1
        %p565 = scmp.lt.s32.totalorder %s23, 0
        %s566 = scalar_select %p565, %s23, 0
        %s567 = sadd.s32 %s566, %s564
        %s568 = smul.addr %s567, 4
        %s569 = scalar_lea.vmem %s3, %s568
      $region52: #{normalized_focal_loss.1} parent=43 // pred_fallthru
        _
      // Predicated region
      $region53: #{normalized_focal_loss.1} parent=43 // pred_check
        %p570 = pneg %p166
      $region54: #{normalized_focal_loss.1} parent=43 // pred_check_branch
        %572 = sbr.rel (%p570) target = $region56
      $region55: #{normalized_focal_loss.1} parent=43 // pred_region
        %p573 = scmp.lt.s32.totalorder %s22, 1
        %s574 = scalar_select %p573, %s22, 1
        %p575 = scmp.lt.s32.totalorder %s23, 0
        %s576 = scalar_select %p575, %s23, 0
        %s577 = sadd.s32 %s576, %s574
        %s578 = smul.addr %s577, 4
        %s579 = scalar_lea.vmem %s4, %s578
      $region56: #{normalized_focal_loss.1} parent=43 // pred_fallthru
        _
    $region44: #{normalized_focal_loss.1} parent=5 // pred_fallthru
      _
  $region6: #{normalized_focal_loss.1} parent=0 // loop_footer
    %s15 = sadd.s32 1, %s11
  $region7: #{normalized_focal_loss.1} parent=0 // loop_footer_branch
    %10 = sbr.rel target = $region3
  $region8: #{normalized_focal_loss.1} parent=0 // loop_exit
    _

</llo_original>
